<compile_context>
chip_gen: v5e
topology: v5e:2x2
jax: 0.10.0
libtpu: 0.0.40
codegen_flags: <defaults>
</compile_context>

<pallas_src>
import math

import jax
import jax.numpy as jnp
from jax.experimental import pallas as pl
from jax.experimental.pallas import tpu as pltpu

_HALF_PI = float(0.5 * math.pi)


def _round_up(v, m):
    return ((v + m - 1) // m) * m


def _divisor_tile(total, unit, target):
    """Largest multiple of `unit` that divides `total` and is <= max(target, unit)."""
    m = total // unit
    target_d = max(target // unit, 1)
    best = 1
    for d in range(1, m + 1):
        if m % d == 0 and d <= target_d:
            best = d
    return best * unit


def _vmem_physical_bytes():
    """Physical VMEM per TensorCore; conservative 64 MiB (v7x) fallback."""
    try:
        info = pltpu.get_tpu_info()
        cap = getattr(info, "vmem_capacity_bytes", None)
        if cap:
            return int(cap)
    except Exception:
        pass
    return 64 * 1024 * 1024


def fourier_kan_kernel(x_ref, t_ref, wc_ref, ws_ref, b_ref, o_ref,
                       cos_scr, sin_scr):
    # x_ref   : (TM, I)     rows of the flattened batch (f32)
    # t_ref   : (I, Kh)     expansion matrix: T[i, g*I+i] = g+1, 0 in padding
    # wc_ref  : (Kh, TN)    cos coefficients  Wc[g*I+i, o] = C[0, o, i, g]
    # ws_ref  : (Kh, TN)    sin coefficients  Ws[g*I+i, o] = C[1, o, i, g]
    # b_ref   : (1, TN)     bias (zero padded)
    # o_ref   : (TM, TN)    output tile (f32)
    # cos_scr : (TM, Kh)    cached cos(arg)   (bf16 or f32)
    # sin_scr : (TM, Kh)    cached sin(arg)   (bf16 or f32)
    #
    # The harmonic expansion + trig are only recomputed on the first
    # output-column tile; the cache is reused for every j of this row tile
    # (j is the innermost grid axis).
    @pl.when(pl.program_id(1) == 0)
    def _():
        # arg[:, g*I+i] = (g+1) * x[:, i]  -- tiny matmul keeps the expansion
        # in a flat, lane-dense 2-D layout (no 3-D reshape / relayout).
        arg = jnp.dot(x_ref[...], t_ref[...],
                      preferred_element_type=jnp.float32)          # (TM, Kh)
        cos_scr[...] = jnp.cos(arg).astype(cos_scr.dtype)
        # sin(z) == cos(z - pi/2): reuse the proven cos lowering.
        sin_scr[...] = jnp.cos(arg - _HALF_PI).astype(sin_scr.dtype)

    # Two accumulating MXU matmuls (bf16 inputs by default, f32 accumulation).
    y = jnp.dot(cos_scr[...], wc_ref[...], preferred_element_type=jnp.float32)
    y = y + jnp.dot(sin_scr[...], ws_ref[...], preferred_element_type=jnp.float32)
    o_ref[...] = (y + b_ref[...]).astype(o_ref.dtype)


def pack_fourier_kan_params(fouriercoeffs, bias=None, *, use_bf16_matmul=True):
    """Repack (2, outdim, inputdim, gridsize) coefficients into kernel
    operands.  Call once per parameter set and reuse across forward calls."""
    fouriercoeffs = jnp.asarray(fouriercoeffs, jnp.float32)
    _, outdim, inputdim, gridsize = fouriercoeffs.shape
    kh = inputdim * gridsize
    kh_pad = _round_up(kh, 128)          # lane-dense contraction length
    o_pad = _round_up(outdim, 128)       # lane-dense output dim

    f32 = jnp.float32
    kvals = jnp.arange(1, gridsize + 1, dtype=f32)                   # (G,)
    eye = jnp.eye(inputdim, dtype=f32)                               # (I, I)
    t3 = kvals[:, None, None] * eye[None, :, :]                      # (G, I, I)
    t_half = jnp.transpose(t3, (1, 0, 2)).reshape(inputdim, kh)      # (I, I*G)
    t_half = jnp.pad(t_half, ((0, 0), (0, kh_pad - kh)))             # (I, Kh)

    wdt = jnp.bfloat16 if use_bf16_matmul else f32
    # W[g*I+i, o] = coeff[branch, o, i, g]
    wc = jnp.transpose(fouriercoeffs[0], (2, 1, 0)).reshape(kh, outdim)
    ws = jnp.transpose(fouriercoeffs[1], (2, 1, 0)).reshape(kh, outdim)
    wc = jnp.pad(wc, ((0, kh_pad - kh), (0, o_pad - outdim))).astype(wdt)
    ws = jnp.pad(ws, ((0, kh_pad - kh), (0, o_pad - outdim))).astype(wdt)

    if bias is None:
        b = jnp.zeros((1, outdim), f32)
    else:
        b = jnp.asarray(bias, f32).reshape(1, outdim)
    b = jnp.pad(b, ((0, 0), (0, o_pad - outdim)))                    # (1, Op)

    return dict(t_half=t_half, wc=wc, ws=ws, b=b,
                inputdim=inputdim, outdim=outdim, gridsize=gridsize,
                kh_pad=kh_pad, o_pad=o_pad, use_bf16_matmul=use_bf16_matmul)


def fourier_kan_forward(x, params, *, tile_m=512, tile_n=512):
    """x: (..., inputdim); params from pack_fourier_kan_params.
    Returns (..., outdim) in float32."""
    inputdim = params["inputdim"]
    outdim = params["outdim"]
    kh_pad = params["kh_pad"]
    o_pad = params["o_pad"]
    use_bf16 = params["use_bf16_matmul"]
    out_shape = x.shape[:-1] + (outdim,)

    x2 = x.reshape(-1, inputdim).astype(jnp.float32)
    n = x2.shape[0]
    if n == 0:                                            # empty-batch edge case
        return jnp.zeros(out_shape, jnp.float32)

    a_dtype = jnp.bfloat16 if use_bf16 else jnp.float32
    ab = 2 if use_bf16 else 4                             # activation bytes
    wb = ab                                               # weight bytes

    # ---- generation-aware tile selection -----------------------------------
    phys = _vmem_physical_bytes()                         # 64 MiB on v7x, 128 on v5e/v6e
    budget = int(phys * 0.70)

    tm = min(_round_up(tile_m, 8), _round_up(n, 8))
    tn = _divisor_tile(o_pad, 128, _round_up(tile_n, 128))   # tn always divides o_pad

    def est(tm_, tn_):
        return (2 * tm_ * inputdim * 4            # x (double-buffered)
                + 2 * inputdim * kh_pad * 4       # t_half
                + 4 * kh_pad * tn_ * wb           # Wc + Ws (double-buffered)
                + 2 * tn_ * 4                     # bias
                + 2 * tm_ * tn_ * 4               # output (double-buffered)
                + 2 * tm_ * kh_pad * ab           # cos/sin scratch
                + tm_ * kh_pad * 4)               # arg temporary (f32) headroom

    while est(tm, tn) > budget:
        if tn > 128:
            tn = _divisor_tile(o_pad, 128, tn // 2)
        elif tm > 8:
            tm = max(8, _round_up(tm // 2, 8))
        else:
            break                                 # huge I*G: best effort

    n_pad = _round_up(n, tm)
    if n_pad != n:
        x2 = jnp.pad(x2, ((0, n_pad - n), (0, 0)))
    grid = (n_pad // tm, o_pad // tn)

    # Always set an explicit scoped-VMEM limit (v5e default is only 16 MiB),
    # but never request more than ~80% of physical VMEM (v7x has 64 MiB/TC).
    vmem_limit = int(min(phys * 0.80, max(2 * est(tm, tn), 32 * 1024 * 1024)))

    y = pl.pallas_call(
        fourier_kan_kernel,
        out_shape=jax.ShapeDtypeStruct((n_pad, o_pad), jnp.float32),
        grid_spec=pltpu.PrefetchScalarGridSpec(
            num_scalar_prefetch=0,
            grid=grid,
            in_specs=[
                pl.BlockSpec((tm, inputdim), lambda i, j: (i, 0)),    # x
                pl.BlockSpec((inputdim, kh_pad), lambda i, j: (0, 0)),# t_half
                pl.BlockSpec((kh_pad, tn), lambda i, j: (0, j)),      # Wc
                pl.BlockSpec((kh_pad, tn), lambda i, j: (0, j)),      # Ws
                pl.BlockSpec((1, tn), lambda i, j: (0, j)),           # bias
            ],
            out_specs=pl.BlockSpec((tm, tn), lambda i, j: (i, j)),
            scratch_shapes=[pltpu.VMEM((tm, kh_pad), a_dtype),        # cos cache
                            pltpu.VMEM((tm, kh_pad), a_dtype)],       # sin cache
        ),
        compiler_params=pltpu.CompilerParams(
            dimension_semantics=("parallel", "arbitrary"),
            vmem_limit_bytes=vmem_limit),
    )(x2, params["t_half"], params["wc"], params["ws"], params["b"])

    return y[:n, :outdim].reshape(out_shape)


def fourier_kan_apply(x, fouriercoeffs, bias=None, *, use_bf16_matmul=True,
                      tile_m=512, tile_n=512):
    """Convenience wrapper: pack params (ideally hoisted by the caller) + run."""
    params = pack_fourier_kan_params(fouriercoeffs, bias,
                                     use_bf16_matmul=use_bf16_matmul)
    return fourier_kan_forward(x, params, tile_m=tile_m, tile_n=tile_n)


def fourier_kan_reference(x, fouriercoeffs, bias):
    """Pure-JAX reference matching the PyTorch forward exactly."""
    inputdim = x.shape[-1]
    _, outdim, _, gridsize = fouriercoeffs.shape
    out_shape = x.shape[:-1] + (outdim,)
    x2 = x.reshape(-1, inputdim)
    k = jnp.arange(1, gridsize + 1, dtype=x2.dtype).reshape(1, 1, 1, gridsize)
    xr = x2.reshape(x2.shape[0], 1, x2.shape[1], 1)
    c = jnp.cos(k * xr)                             # (N, 1, I, G)
    s = jnp.sin(k * xr)
    y = jnp.sum(c * fouriercoeffs[0:1], axis=(-2, -1))
    y = y + jnp.sum(s * fouriercoeffs[1:2], axis=(-2, -1))
    if bias is not None:
        y = y + bias
    return y.reshape(out_shape)


if __name__ == "__main__":
    key = jax.random.PRNGKey(0)

    # ---- Test 1: module-sized config (inputdim=4, outdim=8, gridsize=5) ----
    inputdim, outdim, gridsize = 4, 8, 5
    k_coef, k_x, key = jax.random.split(key, 3)
    grid_norm_factor = math.sqrt(gridsize)   # smooth_initialization=False
    fouriercoeffs = (
        jax.random.normal(k_coef, (2, outdim, inputdim, gridsize), dtype=jnp.float32)
        / (math.sqrt(inputdim) * grid_norm_factor)
    )
    bias = jnp.zeros((1, outdim), dtype=jnp.float32)
    x = jax.random.normal(k_x, (2, 8, inputdim), dtype=jnp.float32)  # (2, 8, 4)

    y_ref = fourier_kan_reference(x, fouriercoeffs, bias)

    # Exact f32 MXU path: tight tolerance.
    p32 = pack_fourier_kan_params(fouriercoeffs, bias, use_bf16_matmul=False)
    y32 = jax.block_until_ready(fourier_kan_forward(x, p32))
    assert y32.shape == (2, 8, outdim), y32.shape
    err32 = float(jnp.max(jnp.abs(y32 - y_ref)))
    assert jnp.allclose(y32, y_ref, atol=1e-4, rtol=1e-4), err32

    # Default bf16 main-matmul path (~1e-2 relative error is the expected
    # accuracy cost of the fast path).
    pbf = pack_fourier_kan_params(fouriercoeffs, bias, use_bf16_matmul=True)
    ybf = jax.block_until_ready(fourier_kan_forward(x, pbf))
    errbf = float(jnp.max(jnp.abs(ybf - y_ref)))
    assert jnp.allclose(ybf, y_ref, atol=5e-2, rtol=5e-2), errbf

    # ---- Test 2: multi-tile grid (exercises cached cos/sin across j tiles,
    #      non-128 outdim padding, and non-divisible row count) --------------
    inputdim2, outdim2, gridsize2 = 8, 200, 7
    k_coef2, k_x2, key = jax.random.split(key, 3)
    coeffs2 = (
        jax.random.normal(k_coef2, (2, outdim2, inputdim2, gridsize2), dtype=jnp.float32)
        / (math.sqrt(inputdim2) * math.sqrt(gridsize2))
    )
    bias2 = jnp.zeros((1, outdim2), dtype=jnp.float32)
    x2 = jax.random.normal(k_x2, (26, inputdim2), dtype=jnp.float32)

    y2_ref = fourier_kan_reference(x2, coeffs2, bias2)
    p2 = pack_fourier_kan_params(coeffs2, bias2, use_bf16_matmul=False)
    y2 = jax.block_until_ready(
        fourier_kan_forward(x2, p2, tile_m=16, tile_n=128))   # grid (2, 2)
    assert y2.shape == (26, outdim2), y2.shape
    err2 = float(jnp.max(jnp.abs(y2 - y2_ref)))
    assert jnp.allclose(y2, y2_ref, atol=1e-4, rtol=1e-4), err2

    print("KERNEL_OK")
</pallas_src>

<mosaic_0001>
module attributes {stable_mosaic.version = 11 : i64} {
  func.func @fourier_kan_kernel(%arg0: i32, %arg1: i32, %arg2: memref<16x4xf32, #tpu.memory_space<vmem>>, %arg3: memref<4x128xf32, #tpu.memory_space<vmem>>, %arg4: memref<128x128xf32, #tpu.memory_space<vmem>>, %arg5: memref<128x128xf32, #tpu.memory_space<vmem>>, %arg6: memref<1x128xf32, #tpu.memory_space<vmem>>, %arg7: memref<16x128xf32, #tpu.memory_space<vmem>>, %arg8: memref<16x128xf32, #tpu.memory_space<vmem>>, %arg9: memref<16x128xf32, #tpu.memory_space<vmem>>) attributes {dimension_semantics = [#tpu.dimension_semantics<parallel>, #tpu.dimension_semantics<arbitrary>], iteration_bounds = array<i64: 1, 1>, scalar_prefetch = 0 : i64, scratch_operands = 2 : i64, tpu.core_type = #tpu.core_type<tc>, window_params = [{transform_indices = @transform_0, window_bounds = array<i64: 16, 4>}, {pipeline_mode = #tpu.pipeline_mode<synchronous>, transform_indices = @transform_1, window_bounds = array<i64: 4, 128>}, {transform_indices = @transform_2, window_bounds = array<i64: 128, 128>}, {transform_indices = @transform_3, window_bounds = array<i64: 128, 128>}, {transform_indices = @transform_4, window_bounds = array<i64: 1, 128>}, {transform_indices = @transform_5, window_bounds = array<i64: 16, 128>}]} {
    %c0_i32 = arith.constant 0 : i32
    %0 = arith.cmpi eq, %arg1, %c0_i32 : i32
    %1 = arith.extui %0 : i1 to i32
    %c0_i32_0 = arith.constant 0 : i32
    %2 = arith.cmpi ne, %1, %c0_i32_0 : i32
    scf.if %2 {
      %c0_13 = arith.constant 0 : index
      %c0_14 = arith.constant 0 : index
      %14 = vector.load %arg2[%c0_13, %c0_14] : memref<16x4xf32, #tpu.memory_space<vmem>>, vector<16x4xf32>
      %c0_15 = arith.constant 0 : index
      %c0_16 = arith.constant 0 : index
      %15 = vector.load %arg3[%c0_15, %c0_16] : memref<4x128xf32, #tpu.memory_space<vmem>>, vector<4x128xf32>
      %cst_17 = arith.constant dense<0.000000e+00> : vector<16x128xf32>
      %16 = tpu.matmul %14, %15, %cst_17 {dimension_numbers = #tpu.dot_dimension_numbers<[1], [0], [0], [1], [0, 0, 1, 1], [], []>} : vector<16x4xf32>, vector<4x128xf32>, vector<16x128xf32> -> vector<16x128xf32>
      %17 = math.cos %16 : vector<16x128xf32>
      %c0_18 = arith.constant 0 : index
      %c0_19 = arith.constant 0 : index
      %18 = vector.load %arg8[%c0_18, %c0_19] : memref<16x128xf32, #tpu.memory_space<vmem>>, vector<16x128xf32>
      tpu.vector_store %arg8[%c0_18, %c0_19], %17 {strides = array<i32>} : memref<16x128xf32, #tpu.memory_space<vmem>>, vector<16x128xf32>,
      %cst_20 = arith.constant 1.57079637 : f32
      %19 = vector.broadcast %cst_20 : f32 to vector<16x128xf32>
      %20 = arith.subf %16, %19 : vector<16x128xf32>
      %21 = math.cos %20 : vector<16x128xf32>
      %c0_21 = arith.constant 0 : index
      %c0_22 = arith.constant 0 : index
      %22 = vector.load %arg9[%c0_21, %c0_22] : memref<16x128xf32, #tpu.memory_space<vmem>>, vector<16x128xf32>
      tpu.vector_store %arg9[%c0_21, %c0_22], %21 {strides = array<i32>} : memref<16x128xf32, #tpu.memory_space<vmem>>, vector<16x128xf32>,
    } else {
    }
    %c0 = arith.constant 0 : index
    %c0_1 = arith.constant 0 : index
    %3 = vector.load %arg8[%c0, %c0_1] : memref<16x128xf32, #tpu.memory_space<vmem>>, vector<16x128xf32>
    %c0_2 = arith.constant 0 : index
    %c0_3 = arith.constant 0 : index
    %4 = vector.load %arg4[%c0_2, %c0_3] : memref<128x128xf32, #tpu.memory_space<vmem>>, vector<128x128xf32>
    %cst = arith.constant dense<0.000000e+00> : vector<16x128xf32>
    %5 = tpu.matmul %3, %4, %cst {dimension_numbers = #tpu.dot_dimension_numbers<[1], [0], [0], [1], [0, 0, 1, 1], [], []>} : vector<16x128xf32>, vector<128x128xf32>, vector<16x128xf32> -> vector<16x128xf32>
    %c0_4 = arith.constant 0 : index
    %c0_5 = arith.constant 0 : index
    %6 = vector.load %arg9[%c0_4, %c0_5] : memref<16x128xf32, #tpu.memory_space<vmem>>, vector<16x128xf32>
    %c0_6 = arith.constant 0 : index
    %c0_7 = arith.constant 0 : index
    %7 = vector.load %arg5[%c0_6, %c0_7] : memref<128x128xf32, #tpu.memory_space<vmem>>, vector<128x128xf32>
    %cst_8 = arith.constant dense<0.000000e+00> : vector<16x128xf32>
    %8 = tpu.matmul %6, %7, %cst_8 {dimension_numbers = #tpu.dot_dimension_numbers<[1], [0], [0], [1], [0, 0, 1, 1], [], []>} : vector<16x128xf32>, vector<128x128xf32>, vector<16x128xf32> -> vector<16x128xf32>
    %9 = arith.addf %5, %8 : vector<16x128xf32>
    %c0_9 = arith.constant 0 : index
    %c0_10 = arith.constant 0 : index
    %10 = vector.load %arg6[%c0_9, %c0_10] : memref<1x128xf32, #tpu.memory_space<vmem>>, vector<1x128xf32>
    %11 = vector.broadcast %10 : vector<1x128xf32> to vector<16x128xf32>
    %12 = arith.addf %9, %11 : vector<16x128xf32>
    %c0_11 = arith.constant 0 : index
    %c0_12 = arith.constant 0 : index
    %13 = vector.load %arg7[%c0_11, %c0_12] : memref<16x128xf32, #tpu.memory_space<vmem>>, vector<16x128xf32>
    tpu.vector_store %arg7[%c0_11, %c0_12], %12 {strides = array<i32>} : memref<16x128xf32, #tpu.memory_space<vmem>>, vector<16x128xf32>,
    return
  }
  func.func @transform_0(%arg0: i32, %arg1: i32) -> (i32, i32) {
    %c0_i32 = arith.constant 0 : i32
    %c0_i32_0 = arith.constant 0 : i32
    return %arg0, %c0_i32 : i32, i32
  }
  func.func @transform_1(%arg0: i32, %arg1: i32) -> (i32, i32) {
    %c0_i32 = arith.constant 0 : i32
    %c0_i32_0 = arith.constant 0 : i32
    %c0_i32_1 = arith.constant 0 : i32
    return %c0_i32, %c0_i32_0 : i32, i32
  }
  func.func @transform_2(%arg0: i32, %arg1: i32) -> (i32, i32) {
    %c0_i32 = arith.constant 0 : i32
    %c0_i32_0 = arith.constant 0 : i32
    return %c0_i32, %arg1 : i32, i32
  }
  func.func @transform_3(%arg0: i32, %arg1: i32) -> (i32, i32) {
    %c0_i32 = arith.constant 0 : i32
    %c0_i32_0 = arith.constant 0 : i32
    return %c0_i32, %arg1 : i32, i32
  }
  func.func @transform_4(%arg0: i32, %arg1: i32) -> (i32, i32) {
    %c0_i32 = arith.constant 0 : i32
    %c0_i32_0 = arith.constant 0 : i32
    return %c0_i32, %arg1 : i32, i32
  }
  func.func @transform_5(%arg0: i32, %arg1: i32) -> (i32, i32) {
    %c0_i32 = arith.constant 0 : i32
    return %arg0, %arg1 : i32, i32
  }
}

</mosaic_0001>

<llo_original>
// kernel: tpu_custom_call.1
$region0: #{tpu_custom_call.1}
  #allocation0 [shape = 'u32[]', space=smem, size = 0x4, offset = 0x4, fixed_abs, tag = 'smem constant byte address 0x4 - core index']
  #allocation1 [shape = 'u32[72,128]{1,0:T(1,128)}', space=vmem, size = 0x9000, scoped, tag = 'internal scratch']
  #allocation2 [shape = 'f32[16,128]{1,0:T(8,128)}', space=vmem, size = 0x2000, scoped, tag = 'scratch operand']
  #allocation3 [shape = 'f32[16,128]{1,0:T(8,128)}', space=vmem, size = 0x2000, scoped, tag = 'scratch operand']
  %s0 = inlined_call_operand.vmem [shape: f32[16,4], index: 0, kind: input, shape index: {}]
  %s1 = inlined_call_operand.vmem [shape: f32[4,128], index: 1, kind: input, shape index: {}]
  %s2 = inlined_call_operand.hbm [shape: f32[128,128], index: 2, kind: input, shape index: {}]
  %s3 = inlined_call_operand.hbm [shape: f32[128,128], index: 3, kind: input, shape index: {}]
  %s4 = inlined_call_operand.vmem [shape: f32[1,128], index: 4, kind: input, shape index: {}]
  %s5 = inlined_call_operand.hbm [shape: f32[16,128], index: 5, kind: output, shape index: {}]
  %s6 = sld [smem:[#allocation0]]
  $region42: #{tpu_custom_call.1} parent=0
    _
  %s8 = ssub.s32 1, %s6
  %s9 = scalar_select 0, %s8, %s6
  $region1: #{tpu_custom_call.1} parent=0
    #allocation4 [shape = 'u8[65536]{0}', space=vmem, size = 0x10000, scoped, tag = 'input window, operand 2, single buffered']
    #allocation5 [shape = 's32[1]{0}', space=sflag, size = 0x4, scoped, tag = 'scoped memory for tpu_custom_call.1']
    #allocation6 [shape = 's32[1]{0}', space=sflag, size = 0x4, scoped, tag = 'scoped memory for tpu_custom_call.1']
    #allocation7 [shape = 'u8[65536]{0}', space=vmem, size = 0x10000, scoped, tag = 'input window, operand 3, single buffered']
    #allocation8 [shape = 's32[1]{0}', space=sflag, size = 0x4, scoped, tag = 'scoped memory for tpu_custom_call.1']
    #allocation9 [shape = 'u8[8192]{0}', space=vmem, size = 0x2000, scoped, tag = 'output window, operand 0, single buffered']
    %10 = vsyncpa [#allocation5], 0
    %11 = vsyncpa [#allocation8], 0
    %12 = vsyncpa [#allocation6], 0
    // Predicated region
    $region2: #{tpu_custom_call.1} parent=1 // pred_check
      _
    $region3: #{tpu_custom_call.1} parent=1 // pred_check_branch
      %14 = sbr.rel (0) target = $region5
    $region4: #{tpu_custom_call.1} parent=1 // pred_region
      _
    $region5: #{tpu_custom_call.1} parent=1 // pred_fallthru
      _
    // Predicated region
    $region6: #{tpu_custom_call.1} parent=1 // pred_check
      _
    $region7: #{tpu_custom_call.1} parent=1 // pred_check_branch
      %16 = sbr.rel (0) target = $region9
    $region8: #{tpu_custom_call.1} parent=1 // pred_region
      _
    $region9: #{tpu_custom_call.1} parent=1 // pred_fallthru
      _
    // Predicated region
    $region10: #{tpu_custom_call.1} parent=1 // pred_check
      _
    $region11: #{tpu_custom_call.1} parent=1 // pred_check_branch
      %18 = sbr.rel (0) target = $region13
    $region12: #{tpu_custom_call.1} parent=1 // pred_region
      %20 = vsyncadd [#allocation5], 0
      %s21 = sshll.u32 %s2, 4
      %s22 = int_to_ptr.hbm [resolvable:$true] %s21
      %s23 = sshll.u32 [#allocation4], 4
      %s24 = int_to_ptr.vmem [resolvable:$true] %s23
      %29 = dma.hbm_to_vmem [thread:$0]  %s22, 2048, %s24, [#allocation5], 128, 128, 8
    $region13: #{tpu_custom_call.1} parent=1 // pred_fallthru
      _
    // Predicated region
    $region14: #{tpu_custom_call.1} parent=1 // pred_check
      _
    $region15: #{tpu_custom_call.1} parent=1 // pred_check_branch
      %31 = sbr.rel (0) target = $region17
    $region16: #{tpu_custom_call.1} parent=1 // pred_region
      %33 = vsyncadd [#allocation8], 0
      %s34 = sshll.u32 %s3, 4
      %s35 = int_to_ptr.hbm [resolvable:$true] %s34
      %s36 = sshll.u32 [#allocation7], 4
      %s37 = int_to_ptr.vmem [resolvable:$true] %s36
      %42 = dma.hbm_to_vmem [thread:$0]  %s35, 2048, %s37, [#allocation8], 128, 128, 8
    $region17: #{tpu_custom_call.1} parent=1 // pred_fallthru
      _
    // Predicated region
    $region18: #{tpu_custom_call.1} parent=1 // pred_check
      _
    $region19: #{tpu_custom_call.1} parent=1 // pred_check_branch
      %44 = sbr.rel (0) target = $region21
    $region20: #{tpu_custom_call.1} parent=1 // pred_region
      _
    $region21: #{tpu_custom_call.1} parent=1 // pred_fallthru
      _
    // Predicated region
    $region22: #{tpu_custom_call.1} parent=1 // pred_check
      _
    $region23: #{tpu_custom_call.1} parent=1 // pred_check_branch
      %46 = sbr.rel (0) target = $region25
    $region24: #{tpu_custom_call.1} parent=1 // pred_region
      %48 = dma.done [#allocation5], 2048
    $region25: #{tpu_custom_call.1} parent=1 // pred_fallthru
      _
    // Predicated region
    $region26: #{tpu_custom_call.1} parent=1 // pred_check
      _
    $region27: #{tpu_custom_call.1} parent=1 // pred_check_branch
      %50 = sbr.rel (0) target = $region29
    $region28: #{tpu_custom_call.1} parent=1 // pred_region
      %52 = dma.done [#allocation8], 2048
    $region29: #{tpu_custom_call.1} parent=1 // pred_fallthru
      _
    %p53 = scmp.eq.s32.totalorder 0, 0
    // Predicated region
    $region30: #{tpu_custom_call.1} parent=1 // pred_check
      %p54 = pneg %p53
    $region31: #{tpu_custom_call.1} parent=1 // pred_check_branch
      %56 = sbr.rel (%p54) target = $region33
    $region32: #{tpu_custom_call.1} parent=1 // pred_region
      %v57 = vld [vmem:[%s0] sm:$0xff]
      %v58 = vld [vmem:[%s0 + $0x8] sm:$0xff]
      %v59 = vld [vmem:[%s1] sm:$0xf]
      %vm60 = vcmask 31744
      %v62 = vsel %vm60, %v57, 0
      %v65 = vsel %vm60, %v58, 0
      %vm67 = vcmask 1043456
      %v69 = vsel %vm67, %v59, 0
      %71 = vmatpush.msra.mxu0 0.0
      %72 = vmatpush.msra.mxu0 0.0
      %73 = vmatpush.msra.mxu0 0.0
      %74 = vmatpush.msra.mxu0 0.0
      %75 = vmatpush.msra.mxu0 0.0
      %76 = vmatpush.msra.mxu0 0.0
      %77 = vmatpush.msra.mxu0 0.0
      %78 = vmatpush.msra.mxu0 0.0
      %79 = vmatpush.msra.mxu0 0.0
      %80 = vmatpush.msra.mxu0 0.0
      %81 = vmatpush.msra.mxu0 0.0
      %82 = vmatpush.msra.mxu0 0.0
      %83 = vmatpush.msra.mxu0 0.0
      %84 = vmatpush.msra.mxu0 0.0
      %85 = vmatpush.msra.mxu0 0.0
      %86 = vmatpush.msra.mxu0 %v69
      %87 = vmatmul.f32.gmra.mxu0 %v62
      %v88 = vpop.f32.mrf.mxu0
      %v89 = vadd.f32 0.0, %v88
      %90 = vmatmul.f32.gmra.mxu0 %v65
      %v91 = vpop.f32.mrf.mxu0
      %v92 = vadd.f32 0.0, %v91
      %93 = vdwg.mxu0
      %v94 = vand.u32 2147483647, %v89
      %vm95 = vcmp.le.f32.partialorder %v94, 0.7853982
      %vm96 = vcmp.lt.s32.totalorder %v89, 0
      %v97 = vand.u32 %v89, 2139095040
      %v98 = vshrl.u32 %v97, 23
      %v99 = vsub.s32 %v98, 127
      %v100 = vand.u32 2147483647, %v89
      %v101 = vand.u32 %v100, 8388607
      %v102 = vor.u32 %v101, 8388608
      %v103 = vsub.s32 0, %v102
      %v104 = vadd.s32 %v99, 1
      %vm105 = vcmp.gt.s32.totalorder %v104, 0
      %v106 = vsel %vm105, %v104, 0
      %v107 = vshrl.u32 %v106, 5
      %v108 = vand.u32 %v106, 31
      %v109 = vsub.s32 32, %v108
      %v110 = vshrl.u32 683565275, %v109
      %v111 = vshll.u32 683565275, %v108
      %v112 = vshrl.u32 2475754826, %v109
      %v113 = vor.u32 %v111, %v112
      %v114 = vshll.u32 2475754826, %v108
      %v115 = vshrl.u32 2131351028, %v109
      %v116 = vor.u32 %v114, %v115
      %v117 = vshll.u32 2131351028, %v108
      %v118 = vshrl.u32 2102212464, %v109
      %v119 = vor.u32 %v117, %v118
      %v120 = vshll.u32 2102212464, %v108
      %v121 = vshrl.u32 920167782, %v109
      %v122 = vor.u32 %v120, %v121
      %v123 = vshll.u32 920167782, %v108
      %v124 = vshrl.u32 1326507024, %v109
      %v125 = vor.u32 %v123, %v124
      %vm126 = vcmp.lt.s32.totalorder %v107, 1
      %vm127 = vcmp.lt.s32.totalorder %v107, 2
      %vm128 = vcmp.lt.s32.totalorder %v107, 3
      %vm129 = vcmp.lt.s32.totalorder %v107, 4
      %v130 = vsel %vm126, %v110, %v113
      %v131 = vsel %vm129, %v119, 2102212464
      %v132 = vsel %vm128, %v116, %v131
      %v133 = vsel %vm127, %v130, %v132
      %v134 = vsel %vm126, %v113, %v116
      %v135 = vsel %vm129, %v122, 920167782
      %v136 = vsel %vm128, %v119, %v135
      %v137 = vsel %vm127, %v134, %v136
      %v138 = vsel %vm126, %v116, %v119
      %v139 = vsel %vm129, %v125, 1326507024
      %v140 = vsel %vm128, %v122, %v139
      %v141 = vsel %vm127, %v138, %v140
      %v142 = vshll.u32 %v102, 8
      %v143 = vand.u32 %v142, 65535
      %v144 = vshrl.u32 %v142, 16
      %v145 = vand.u32 %v141, 65535
      %v146 = vshrl.u32 %v141, 16
      %v147 = vmul.u32 %v143, %v145
      %v148 = vmul.u32 %v143, %v146
      %v149 = vmul.u32 %v144, %v145
      %v150 = vmul.u32 %v144, %v146
      %v151 = vshll.u32 %v148, 16
      %v152 = vshrl.u32 %v148, 16
      %v153 = vshll.u32 %v149, 16
      %v154 = vshrl.u32 %v149, 16
      %vm155 = vc.u32 %v147, %v151
      %v156 = vsel %vm155, 1, 0
      %v157 = vadd.s32 %v147, %v151
      %v158 = vadd.s32 %v150, %v156
      %vm159 = vc.u32 %v157, %v153
      %v160 = vsel %vm159, 1, 0
      %v161 = vadd.s32 %v157, %v153
      %v162 = vadd.s32 %v158, %v160
      %v163 = vadd.s32 %v162, %v152
      %v164 = vadd.s32 %v163, %v154
      %v165 = vand.u32 %v142, 65535
      %v166 = vshrl.u32 %v142, 16
      %v167 = vand.u32 %v137, 65535
      %v168 = vshrl.u32 %v137, 16
      %v169 = vmul.u32 %v165, %v167
      %v170 = vmul.u32 %v165, %v168
      %v171 = vmul.u32 %v166, %v167
      %v172 = vmul.u32 %v166, %v168
      %v173 = vshll.u32 %v170, 16
      %v174 = vshrl.u32 %v170, 16
      %v175 = vshll.u32 %v171, 16
      %v176 = vshrl.u32 %v171, 16
      %vm177 = vc.u32 %v169, %v173
      %v178 = vsel %vm177, 1, 0
      %v179 = vadd.s32 %v169, %v173
      %v180 = vadd.s32 %v172, %v178
      %vm181 = vc.u32 %v179, %v175
      %v182 = vsel %vm181, 1, 0
      %v183 = vadd.s32 %v179, %v175
      %v184 = vadd.s32 %v180, %v182
      %v185 = vadd.s32 %v184, %v174
      %v186 = vadd.s32 %v185, %v176
      %v187 = vmul.u32 %v142, %v133
      %v188 = vadd.s32 %v164, %v183
      %vm189 = vc.u32 %v164, %v183
      %v190 = vadd.s32 %v186, 1
      %v191 = vsel %vm189, %v190, %v186
      %v192 = vadd.s32 %v187, %v191
      %v193 = vadd.s32 %v192, 536870912
      %v194 = vshrl.u32 %v193, 30
      %v195 = vshll.u32 %v194, 30
      %v196 = vsub.s32 %v192, %v195
      %vm197 = vcmp.lt.s32.totalorder %v196, 0
      %v198 = vsub.s32 0, %v196
      %v199 = vsel %vm197, %v198, %v196
      %v200 = vclz %v199
      %v201 = vsub.s32 %v200, 2
      %vm202 = vcmp.gt.s32.totalorder 0, %v201
      %v203 = vsel %vm202, 0, %v201
      %v204 = vsub.s32 32, %v203
      %v205 = vshll.u32 %v196, %v203
      %v206 = vshrl.u32 %v188, %v204
      %v207 = vor.u32 %v205, %v206
      %v208 = vsub.s32 4294967266, %v203
      %v209 = vadd.s32 %v208, 127
      %v210 = vshll.u32 %v209, 23
      %v211 = vor.u32 4788187, %v210
      %v212 = vand.u32 2147483647, %v211
      %v214 = vcvt.s32.f32 %v207
      %v215 = vmul.f32 %v214, %v212
      %v216 = vxor.u32 %v215, 2147483648
      %v217 = vsel %vm96, %v216, %v215
      %v218 = vsub.s32 4, %v194
      %v219 = vsel %vm96, %v218, %v194
      %v220 = vsel %vm95, %v89, %v217
      %v221 = vsel %vm95, 0, %v219
      %v222 = vmul.f32 %v220, %v220
      %v223 = vmul.f32 %v222, -0.001358992
      %v224 = vadd.f32 %v223, 0.041655596
      %v225 = vmul.f32 %v222, %v224
      %v226 = vadd.f32 %v225, -0.4999988
      %v227 = vmul.f32 %v222, %v226
      %v228 = vadd.f32 1.0, %v227
      %v229 = vmul.f32 %v220, %v220
      %v230 = vmul.f32 %v229, -0.00019511016
      %v231 = vadd.f32 %v230, 0.008332121
      %v232 = vmul.f32 %v229, %v231
      %v233 = vadd.f32 %v232, -0.16666654
      %v234 = vmul.f32 %v229, %v233
      %v235 = vadd.f32 %v234, 1.0
      %v236 = vmul.f32 %v235, %v220
      %vm237 = vweird.f32 %v89
      %v238 = vand.u32 %v221, 3
      %vm239 = vcmp.lt.s32.totalorder %v238, 2
      %vm240 = vcmp.eq.s32.totalorder %v238, 0
      %v241 = vxor.u32 %v236, 2147483648
      %v242 = vsel %vm240, %v228, %v241
      %vm243 = vcmp.eq.s32.totalorder %v238, 2
      %v244 = vxor.u32 %v228, 2147483648
      %v245 = vsel %vm243, %v244, %v236
      %v246 = vsel %vm239, %v242, %v245
      %v247 = vsel %vm237, nan, %v246
      %v248 = vand.u32 2147483647, %v92
      %vm249 = vcmp.le.f32.partialorder %v248, 0.7853982
      %vm250 = vcmp.lt.s32.totalorder %v92, 0
      %v251 = vand.u32 %v92, 2139095040
      %v252 = vshrl.u32 %v251, 23
      %v253 = vsub.s32 %v252, 127
      %v254 = vand.u32 2147483647, %v92
      %v255 = vand.u32 %v254, 8388607
      %v256 = vor.u32 %v255, 8388608
      %v257 = vsub.s32 0, %v256
      %v258 = vadd.s32 %v253, 1
      %vm259 = vcmp.gt.s32.totalorder %v258, 0
      %v260 = vsel %vm259, %v258, 0
      %v261 = vshrl.u32 %v260, 5
      %v262 = vand.u32 %v260, 31
      %v263 = vsub.s32 32, %v262
      %v264 = vshrl.u32 683565275, %v263
      %v265 = vshll.u32 683565275, %v262
      %v266 = vshrl.u32 2475754826, %v263
      %v267 = vor.u32 %v265, %v266
      %v268 = vshll.u32 2475754826, %v262
      %v269 = vshrl.u32 2131351028, %v263
      %v270 = vor.u32 %v268, %v269
      %v271 = vshll.u32 2131351028, %v262
      %v272 = vshrl.u32 2102212464, %v263
      %v273 = vor.u32 %v271, %v272
      %v274 = vshll.u32 2102212464, %v262
      %v275 = vshrl.u32 920167782, %v263
      %v276 = vor.u32 %v274, %v275
      %v277 = vshll.u32 920167782, %v262
      %v278 = vshrl.u32 1326507024, %v263
      %v279 = vor.u32 %v277, %v278
      %vm280 = vcmp.lt.s32.totalorder %v261, 1
      %vm281 = vcmp.lt.s32.totalorder %v261, 2
      %vm282 = vcmp.lt.s32.totalorder %v261, 3
      %vm283 = vcmp.lt.s32.totalorder %v261, 4
      %v284 = vsel %vm280, %v264, %v267
      %v285 = vsel %vm283, %v273, 2102212464
      %v286 = vsel %vm282, %v270, %v285
      %v287 = vsel %vm281, %v284, %v286
      %v288 = vsel %vm280, %v267, %v270
      %v289 = vsel %vm283, %v276, 920167782
      %v290 = vsel %vm282, %v273, %v289
      %v291 = vsel %vm281, %v288, %v290
      %v292 = vsel %vm280, %v270, %v273
      %v293 = vsel %vm283, %v279, 1326507024
      %v294 = vsel %vm282, %v276, %v293
      %v295 = vsel %vm281, %v292, %v294
      %v296 = vshll.u32 %v256, 8
      %v297 = vand.u32 %v296, 65535
      %v298 = vshrl.u32 %v296, 16
      %v299 = vand.u32 %v295, 65535
      %v300 = vshrl.u32 %v295, 16
      %v301 = vmul.u32 %v297, %v299
      %v302 = vmul.u32 %v297, %v300
      %v303 = vmul.u32 %v298, %v299
      %v304 = vmul.u32 %v298, %v300
      %v305 = vshll.u32 %v302, 16
      %v306 = vshrl.u32 %v302, 16
      %v307 = vshll.u32 %v303, 16
      %v308 = vshrl.u32 %v303, 16
      %vm309 = vc.u32 %v301, %v305
      %v310 = vsel %vm309, 1, 0
      %v311 = vadd.s32 %v301, %v305
      %v312 = vadd.s32 %v304, %v310
      %vm313 = vc.u32 %v311, %v307
      %v314 = vsel %vm313, 1, 0
      %v315 = vadd.s32 %v311, %v307
      %v316 = vadd.s32 %v312, %v314
      %v317 = vadd.s32 %v316, %v306
      %v318 = vadd.s32 %v317, %v308
      %v319 = vand.u32 %v296, 65535
      %v320 = vshrl.u32 %v296, 16
      %v321 = vand.u32 %v291, 65535
      %v322 = vshrl.u32 %v291, 16
      %v323 = vmul.u32 %v319, %v321
      %v324 = vmul.u32 %v319, %v322
      %v325 = vmul.u32 %v320, %v321
      %v326 = vmul.u32 %v320, %v322
      %v327 = vshll.u32 %v324, 16
      %v328 = vshrl.u32 %v324, 16
      %v329 = vshll.u32 %v325, 16
      %v330 = vshrl.u32 %v325, 16
      %vm331 = vc.u32 %v323, %v327
      %v332 = vsel %vm331, 1, 0
      %v333 = vadd.s32 %v323, %v327
      %v334 = vadd.s32 %v326, %v332
      %vm335 = vc.u32 %v333, %v329
      %v336 = vsel %vm335, 1, 0
      %v337 = vadd.s32 %v333, %v329
      %v338 = vadd.s32 %v334, %v336
      %v339 = vadd.s32 %v338, %v328
      %v340 = vadd.s32 %v339, %v330
      %v341 = vmul.u32 %v296, %v287
      %v342 = vadd.s32 %v318, %v337
      %vm343 = vc.u32 %v318, %v337
      %v344 = vadd.s32 %v340, 1
      %v345 = vsel %vm343, %v344, %v340
      %v346 = vadd.s32 %v341, %v345
      %v347 = vadd.s32 %v346, 536870912
      %v348 = vshrl.u32 %v347, 30
      %v349 = vshll.u32 %v348, 30
      %v350 = vsub.s32 %v346, %v349
      %vm351 = vcmp.lt.s32.totalorder %v350, 0
      %v352 = vsub.s32 0, %v350
      %v353 = vsel %vm351, %v352, %v350
      %v354 = vclz %v353
      %v355 = vsub.s32 %v354, 2
      %vm356 = vcmp.gt.s32.totalorder 0, %v355
      %v357 = vsel %vm356, 0, %v355
      %v358 = vsub.s32 32, %v357
      %v359 = vshll.u32 %v350, %v357
      %v360 = vshrl.u32 %v342, %v358
      %v361 = vor.u32 %v359, %v360
      %v362 = vsub.s32 4294967266, %v357
      %v363 = vadd.s32 %v362, 127
      %v364 = vshll.u32 %v363, 23
      %v365 = vor.u32 4788187, %v364
      %v366 = vand.u32 2147483647, %v365
      %v368 = vcvt.s32.f32 %v361
      %v369 = vmul.f32 %v368, %v366
      %v370 = vxor.u32 %v369, 2147483648
      %v371 = vsel %vm250, %v370, %v369
      %v372 = vsub.s32 4, %v348
      %v373 = vsel %vm250, %v372, %v348
      %v374 = vsel %vm249, %v92, %v371
      %v375 = vsel %vm249, 0, %v373
      %v376 = vmul.f32 %v374, %v374
      %v377 = vmul.f32 %v376, -0.001358992
      %v378 = vadd.f32 %v377, 0.041655596
      %v379 = vmul.f32 %v376, %v378
      %v380 = vadd.f32 %v379, -0.4999988
      %v381 = vmul.f32 %v376, %v380
      %v382 = vadd.f32 1.0, %v381
      %v383 = vmul.f32 %v374, %v374
      %v384 = vmul.f32 %v383, -0.00019511016
      %v385 = vadd.f32 %v384, 0.008332121
      %v386 = vmul.f32 %v383, %v385
      %v387 = vadd.f32 %v386, -0.16666654
      %v388 = vmul.f32 %v383, %v387
      %v389 = vadd.f32 %v388, 1.0
      %v390 = vmul.f32 %v389, %v374
      %vm391 = vweird.f32 %v92
      %v392 = vand.u32 %v375, 3
      %vm393 = vcmp.lt.s32.totalorder %v392, 2
      %vm394 = vcmp.eq.s32.totalorder %v392, 0
      %v395 = vxor.u32 %v390, 2147483648
      %v396 = vsel %vm394, %v382, %v395
      %vm397 = vcmp.eq.s32.totalorder %v392, 2
      %v398 = vxor.u32 %v382, 2147483648
      %v399 = vsel %vm397, %v398, %v390
      %v400 = vsel %vm393, %v396, %v399
      %v401 = vsel %vm391, nan, %v400
      %402 = vst [vmem:[#allocation2] sm:$0xff] %v247
      %403 = vst [vmem:[#allocation2 + $0x8] sm:$0xff] %v401
      %v404 = vsub.f32 %v89, 1.5707964
      %v405 = vsub.f32 %v92, 1.5707964
      %v406 = vand.u32 2147483647, %v404
      %vm407 = vcmp.le.f32.partialorder %v406, 0.7853982
      %vm408 = vcmp.lt.s32.totalorder %v404, 0
      %v409 = vand.u32 %v404, 2139095040
      %v410 = vshrl.u32 %v409, 23
      %v411 = vsub.s32 %v410, 127
      %v412 = vand.u32 2147483647, %v404
      %v413 = vand.u32 %v412, 8388607
      %v414 = vor.u32 %v413, 8388608
      %v415 = vsub.s32 0, %v414
      %v416 = vadd.s32 %v411, 1
      %vm417 = vcmp.gt.s32.totalorder %v416, 0
      %v418 = vsel %vm417, %v416, 0
      %v419 = vshrl.u32 %v418, 5
      %v420 = vand.u32 %v418, 31
      %v421 = vsub.s32 32, %v420
      %v422 = vshrl.u32 683565275, %v421
      %v423 = vshll.u32 683565275, %v420
      %v424 = vshrl.u32 2475754826, %v421
      %v425 = vor.u32 %v423, %v424
      %v426 = vshll.u32 2475754826, %v420
      %v427 = vshrl.u32 2131351028, %v421
      %v428 = vor.u32 %v426, %v427
      %v429 = vshll.u32 2131351028, %v420
      %v430 = vshrl.u32 2102212464, %v421
      %v431 = vor.u32 %v429, %v430
      %v432 = vshll.u32 2102212464, %v420
      %v433 = vshrl.u32 920167782, %v421
      %v434 = vor.u32 %v432, %v433
      %v435 = vshll.u32 920167782, %v420
      %v436 = vshrl.u32 1326507024, %v421
      %v437 = vor.u32 %v435, %v436
      %vm438 = vcmp.lt.s32.totalorder %v419, 1
      %vm439 = vcmp.lt.s32.totalorder %v419, 2
      %vm440 = vcmp.lt.s32.totalorder %v419, 3
      %vm441 = vcmp.lt.s32.totalorder %v419, 4
      %v442 = vsel %vm438, %v422, %v425
      %v443 = vsel %vm441, %v431, 2102212464
      %v444 = vsel %vm440, %v428, %v443
      %v445 = vsel %vm439, %v442, %v444
      %v446 = vsel %vm438, %v425, %v428
      %v447 = vsel %vm441, %v434, 920167782
      %v448 = vsel %vm440, %v431, %v447
      %v449 = vsel %vm439, %v446, %v448
      %v450 = vsel %vm438, %v428, %v431
      %v451 = vsel %vm441, %v437, 1326507024
      %v452 = vsel %vm440, %v434, %v451
      %v453 = vsel %vm439, %v450, %v452
      %v454 = vshll.u32 %v414, 8
      %v455 = vand.u32 %v454, 65535
      %v456 = vshrl.u32 %v454, 16
      %v457 = vand.u32 %v453, 65535
      %v458 = vshrl.u32 %v453, 16
      %v459 = vmul.u32 %v455, %v457
      %v460 = vmul.u32 %v455, %v458
      %v461 = vmul.u32 %v456, %v457
      %v462 = vmul.u32 %v456, %v458
      %v463 = vshll.u32 %v460, 16
      %v464 = vshrl.u32 %v460, 16
      %v465 = vshll.u32 %v461, 16
      %v466 = vshrl.u32 %v461, 16
      %vm467 = vc.u32 %v459, %v463
      %v468 = vsel %vm467, 1, 0
      %v469 = vadd.s32 %v459, %v463
      %v470 = vadd.s32 %v462, %v468
      %vm471 = vc.u32 %v469, %v465
      %v472 = vsel %vm471, 1, 0
      %v473 = vadd.s32 %v469, %v465
      %v474 = vadd.s32 %v470, %v472
      %v475 = vadd.s32 %v474, %v464
      %v476 = vadd.s32 %v475, %v466
      %v477 = vand.u32 %v454, 65535
      %v478 = vshrl.u32 %v454, 16
      %v479 = vand.u32 %v449, 65535
      %v480 = vshrl.u32 %v449, 16
      %v481 = vmul.u32 %v477, %v479
      %v482 = vmul.u32 %v477, %v480
      %v483 = vmul.u32 %v478, %v479
      %v484 = vmul.u32 %v478, %v480
      %v485 = vshll.u32 %v482, 16
      %v486 = vshrl.u32 %v482, 16
      %v487 = vshll.u32 %v483, 16
      %v488 = vshrl.u32 %v483, 16
      %vm489 = vc.u32 %v481, %v485
      %v490 = vsel %vm489, 1, 0
      %v491 = vadd.s32 %v481, %v485
      %v492 = vadd.s32 %v484, %v490
      %vm493 = vc.u32 %v491, %v487
      %v494 = vsel %vm493, 1, 0
      %v495 = vadd.s32 %v491, %v487
      %v496 = vadd.s32 %v492, %v494
      %v497 = vadd.s32 %v496, %v486
      %v498 = vadd.s32 %v497, %v488
      %v499 = vmul.u32 %v454, %v445
      %v500 = vadd.s32 %v476, %v495
      %vm501 = vc.u32 %v476, %v495
      %v502 = vadd.s32 %v498, 1
      %v503 = vsel %vm501, %v502, %v498
      %v504 = vadd.s32 %v499, %v503
      %v505 = vadd.s32 %v504, 536870912
      %v506 = vshrl.u32 %v505, 30
      %v507 = vshll.u32 %v506, 30
      %v508 = vsub.s32 %v504, %v507
      %vm509 = vcmp.lt.s32.totalorder %v508, 0
      %v510 = vsub.s32 0, %v508
      %v511 = vsel %vm509, %v510, %v508
      %v512 = vclz %v511
      %v513 = vsub.s32 %v512, 2
      %vm514 = vcmp.gt.s32.totalorder 0, %v513
      %v515 = vsel %vm514, 0, %v513
      %v516 = vsub.s32 32, %v515
      %v517 = vshll.u32 %v508, %v515
      %v518 = vshrl.u32 %v500, %v516
      %v519 = vor.u32 %v517, %v518
      %v520 = vsub.s32 4294967266, %v515
      %v521 = vadd.s32 %v520, 127
      %v522 = vshll.u32 %v521, 23
      %v523 = vor.u32 4788187, %v522
      %v524 = vand.u32 2147483647, %v523
      %v526 = vcvt.s32.f32 %v519
      %v527 = vmul.f32 %v526, %v524
      %v528 = vxor.u32 %v527, 2147483648
      %v529 = vsel %vm408, %v528, %v527
      %v530 = vsub.s32 4, %v506
      %v531 = vsel %vm408, %v530, %v506
      %v532 = vsel %vm407, %v404, %v529
      %v533 = vsel %vm407, 0, %v531
      %v534 = vmul.f32 %v532, %v532
      %v535 = vmul.f32 %v534, -0.001358992
      %v536 = vadd.f32 %v535, 0.041655596
      %v537 = vmul.f32 %v534, %v536
      %v538 = vadd.f32 %v537, -0.4999988
      %v539 = vmul.f32 %v534, %v538
      %v540 = vadd.f32 1.0, %v539
      %v541 = vmul.f32 %v532, %v532
      %v542 = vmul.f32 %v541, -0.00019511016
      %v543 = vadd.f32 %v542, 0.008332121
      %v544 = vmul.f32 %v541, %v543
      %v545 = vadd.f32 %v544, -0.16666654
      %v546 = vmul.f32 %v541, %v545
      %v547 = vadd.f32 %v546, 1.0
      %v548 = vmul.f32 %v547, %v532
      %vm549 = vweird.f32 %v404
      %v550 = vand.u32 %v533, 3
      %vm551 = vcmp.lt.s32.totalorder %v550, 2
      %vm552 = vcmp.eq.s32.totalorder %v550, 0
      %v553 = vxor.u32 %v548, 2147483648
      %v554 = vsel %vm552, %v540, %v553
      %vm555 = vcmp.eq.s32.totalorder %v550, 2
      %v556 = vxor.u32 %v540, 2147483648
      %v557 = vsel %vm555, %v556, %v548
      %v558 = vsel %vm551, %v554, %v557
      %v559 = vsel %vm549, nan, %v558
      %v560 = vand.u32 2147483647, %v405
      %vm561 = vcmp.le.f32.partialorder %v560, 0.7853982
      %vm562 = vcmp.lt.s32.totalorder %v405, 0
      %v563 = vand.u32 %v405, 2139095040
      %v564 = vshrl.u32 %v563, 23
      %v565 = vsub.s32 %v564, 127
      %v566 = vand.u32 2147483647, %v405
      %v567 = vand.u32 %v566, 8388607
      %v568 = vor.u32 %v567, 8388608
      %v569 = vsub.s32 0, %v568
      %v570 = vadd.s32 %v565, 1
      %vm571 = vcmp.gt.s32.totalorder %v570, 0
      %v572 = vsel %vm571, %v570, 0
      %v573 = vshrl.u32 %v572, 5
      %v574 = vand.u32 %v572, 31
      %v575 = vsub.s32 32, %v574
      %v576 = vshrl.u32 683565275, %v575
      %v577 = vshll.u32 683565275, %v574
      %v578 = vshrl.u32 2475754826, %v575
      %v579 = vor.u32 %v577, %v578
      %v580 = vshll.u32 2475754826, %v574
      %v581 = vshrl.u32 2131351028, %v575
      %v582 = vor.u32 %v580, %v581
      %v583 = vshll.u32 2131351028, %v574
      %v584 = vshrl.u32 2102212464, %v575
      %v585 = vor.u32 %v583, %v584
      %v586 = vshll.u32 2102212464, %v574
      %v587 = vshrl.u32 920167782, %v575
      %v588 = vor.u32 %v586, %v587
      %v589 = vshll.u32 920167782, %v574
      %v590 = vshrl.u32 1326507024, %v575
      %v591 = vor.u32 %v589, %v590
      %vm592 = vcmp.lt.s32.totalorder %v573, 1
      %vm593 = vcmp.lt.s32.totalorder %v573, 2
      %vm594 = vcmp.lt.s32.totalorder %v573, 3
      %vm595 = vcmp.lt.s32.totalorder %v573, 4
      %v596 = vsel %vm592, %v576, %v579
      %v597 = vsel %vm595, %v585, 2102212464
      %v598 = vsel %vm594, %v582, %v597
      %v599 = vsel %vm593, %v596, %v598
      %v600 = vsel %vm592, %v579, %v582
      %v601 = vsel %vm595, %v588, 920167782
      %v602 = vsel %vm594, %v585, %v601
      %v603 = vsel %vm593, %v600, %v602
      %v604 = vsel %vm592, %v582, %v585
      %v605 = vsel %vm595, %v591, 1326507024
      %v606 = vsel %vm594, %v588, %v605
      %v607 = vsel %vm593, %v604, %v606
      %v608 = vshll.u32 %v568, 8
      %v609 = vand.u32 %v608, 65535
      %v610 = vshrl.u32 %v608, 16
      %v611 = vand.u32 %v607, 65535
      %v612 = vshrl.u32 %v607, 16
      %v613 = vmul.u32 %v609, %v611
      %v614 = vmul.u32 %v609, %v612
      %v615 = vmul.u32 %v610, %v611
      %v616 = vmul.u32 %v610, %v612
      %v617 = vshll.u32 %v614, 16
      %v618 = vshrl.u32 %v614, 16
      %v619 = vshll.u32 %v615, 16
      %v620 = vshrl.u32 %v615, 16
      %vm621 = vc.u32 %v613, %v617
      %v622 = vsel %vm621, 1, 0
      %v623 = vadd.s32 %v613, %v617
      %v624 = vadd.s32 %v616, %v622
      %vm625 = vc.u32 %v623, %v619
      %v626 = vsel %vm625, 1, 0
      %v627 = vadd.s32 %v623, %v619
      %v628 = vadd.s32 %v624, %v626
      %v629 = vadd.s32 %v628, %v618
      %v630 = vadd.s32 %v629, %v620
      %v631 = vand.u32 %v608, 65535
      %v632 = vshrl.u32 %v608, 16
      %v633 = vand.u32 %v603, 65535
      %v634 = vshrl.u32 %v603, 16
      %v635 = vmul.u32 %v631, %v633
      %v636 = vmul.u32 %v631, %v634
      %v637 = vmul.u32 %v632, %v633
      %v638 = vmul.u32 %v632, %v634
      %v639 = vshll.u32 %v636, 16
      %v640 = vshrl.u32 %v636, 16
      %v641 = vshll.u32 %v637, 16
      %v642 = vshrl.u32 %v637, 16
      %vm643 = vc.u32 %v635, %v639
      %v644 = vsel %vm643, 1, 0
      %v645 = vadd.s32 %v635, %v639
      %v646 = vadd.s32 %v638, %v644
      %vm647 = vc.u32 %v645, %v641
      %v648 = vsel %vm647, 1, 0
      %v649 = vadd.s32 %v645, %v641
      %v650 = vadd.s32 %v646, %v648
      %v651 = vadd.s32 %v650, %v640
      %v652 = vadd.s32 %v651, %v642
      %v653 = vmul.u32 %v608, %v599
      %v654 = vadd.s32 %v630, %v649
      %vm655 = vc.u32 %v630, %v649
      %v656 = vadd.s32 %v652, 1
      %v657 = vsel %vm655, %v656, %v652
      %v658 = vadd.s32 %v653, %v657
      %v659 = vadd.s32 %v658, 536870912
      %v660 = vshrl.u32 %v659, 30
      %v661 = vshll.u32 %v660, 30
      %v662 = vsub.s32 %v658, %v661
      %vm663 = vcmp.lt.s32.totalorder %v662, 0
      %v664 = vsub.s32 0, %v662
      %v665 = vsel %vm663, %v664, %v662
      %v666 = vclz %v665
      %v667 = vsub.s32 %v666, 2
      %vm668 = vcmp.gt.s32.totalorder 0, %v667
      %v669 = vsel %vm668, 0, %v667
      %v670 = vsub.s32 32, %v669
      %v671 = vshll.u32 %v662, %v669
      %v672 = vshrl.u32 %v654, %v670
      %v673 = vor.u32 %v671, %v672
      %v674 = vsub.s32 4294967266, %v669
      %v675 = vadd.s32 %v674, 127
      %v676 = vshll.u32 %v675, 23
      %v677 = vor.u32 4788187, %v676
      %v678 = vand.u32 2147483647, %v677
      %v680 = vcvt.s32.f32 %v673
      %v681 = vmul.f32 %v680, %v678
      %v682 = vxor.u32 %v681, 2147483648
      %v683 = vsel %vm562, %v682, %v681
      %v684 = vsub.s32 4, %v660
      %v685 = vsel %vm562, %v684, %v660
      %v686 = vsel %vm561, %v405, %v683
      %v687 = vsel %vm561, 0, %v685
      %v688 = vmul.f32 %v686, %v686
      %v689 = vmul.f32 %v688, -0.001358992
      %v690 = vadd.f32 %v689, 0.041655596
      %v691 = vmul.f32 %v688, %v690
      %v692 = vadd.f32 %v691, -0.4999988
      %v693 = vmul.f32 %v688, %v692
      %v694 = vadd.f32 1.0, %v693
      %v695 = vmul.f32 %v686, %v686
      %v696 = vmul.f32 %v695, -0.00019511016
      %v697 = vadd.f32 %v696, 0.008332121
      %v698 = vmul.f32 %v695, %v697
      %v699 = vadd.f32 %v698, -0.16666654
      %v700 = vmul.f32 %v695, %v699
      %v701 = vadd.f32 %v700, 1.0
      %v702 = vmul.f32 %v701, %v686
      %vm703 = vweird.f32 %v405
      %v704 = vand.u32 %v687, 3
      %vm705 = vcmp.lt.s32.totalorder %v704, 2
      %vm706 = vcmp.eq.s32.totalorder %v704, 0
      %v707 = vxor.u32 %v702, 2147483648
      %v708 = vsel %vm706, %v694, %v707
      %vm709 = vcmp.eq.s32.totalorder %v704, 2
      %v710 = vxor.u32 %v694, 2147483648
      %v711 = vsel %vm709, %v710, %v702
      %v712 = vsel %vm705, %v708, %v711
      %v713 = vsel %vm703, nan, %v712
      %714 = vst [vmem:[#allocation3] sm:$0xff] %v559
      %715 = vst [vmem:[#allocation3 + $0x8] sm:$0xff] %v713
    $region33: #{tpu_custom_call.1} parent=1 // pred_fallthru
      _
    %v716 = vld [vmem:[#allocation2] sm:$0xff]
    %v717 = vld [vmem:[#allocation2 + $0x8] sm:$0xff]
    %v718 = vld [vmem:[#allocation4] sm:$0xff]
    %v719 = vld [vmem:[#allocation4 + $0x8] sm:$0xff]
    %v720 = vld [vmem:[#allocation4 + $0x10] sm:$0xff]
    %v721 = vld [vmem:[#allocation4 + $0x18] sm:$0xff]
    %v722 = vld [vmem:[#allocation4 + $0x20] sm:$0xff]
    %v723 = vld [vmem:[#allocation4 + $0x28] sm:$0xff]
    %v724 = vld [vmem:[#allocation4 + $0x30] sm:$0xff]
    %v725 = vld [vmem:[#allocation4 + $0x38] sm:$0xff]
    %v726 = vld [vmem:[#allocation4 + $0x40] sm:$0xff]
    %v727 = vld [vmem:[#allocation4 + $0x48] sm:$0xff]
    %v728 = vld [vmem:[#allocation4 + $0x50] sm:$0xff]
    %v729 = vld [vmem:[#allocation4 + $0x58] sm:$0xff]
    %v730 = vld [vmem:[#allocation4 + $0x60] sm:$0xff]
    %v731 = vld [vmem:[#allocation4 + $0x68] sm:$0xff]
    %v732 = vld [vmem:[#allocation4 + $0x70] sm:$0xff]
    %v733 = vld [vmem:[#allocation4 + $0x78] sm:$0xff]
    %v734 = vld [vmem:[#allocation3] sm:$0xff]
    %v735 = vld [vmem:[#allocation3 + $0x8] sm:$0xff]
    %v736 = vld [vmem:[#allocation7] sm:$0xff]
    %v737 = vld [vmem:[#allocation7 + $0x8] sm:$0xff]
    %v738 = vld [vmem:[#allocation7 + $0x10] sm:$0xff]
    %v739 = vld [vmem:[#allocation7 + $0x18] sm:$0xff]
    %v740 = vld [vmem:[#allocation7 + $0x20] sm:$0xff]
    %v741 = vld [vmem:[#allocation7 + $0x28] sm:$0xff]
    %v742 = vld [vmem:[#allocation7 + $0x30] sm:$0xff]
    %v743 = vld [vmem:[#allocation7 + $0x38] sm:$0xff]
    %v744 = vld [vmem:[#allocation7 + $0x40] sm:$0xff]
    %v745 = vld [vmem:[#allocation7 + $0x48] sm:$0xff]
    %v746 = vld [vmem:[#allocation7 + $0x50] sm:$0xff]
    %v747 = vld [vmem:[#allocation7 + $0x58] sm:$0xff]
    %v748 = vld [vmem:[#allocation7 + $0x60] sm:$0xff]
    %v749 = vld [vmem:[#allocation7 + $0x68] sm:$0xff]
    %v750 = vld [vmem:[#allocation7 + $0x70] sm:$0xff]
    %v751 = vld [vmem:[#allocation7 + $0x78] sm:$0xff]
    %752 = vmatpush.msra.mxu0 %v751
    %753 = vmatpush.msra.mxu0 %v750
    %754 = vmatpush.msra.mxu0 %v749
    %755 = vmatpush.msra.mxu0 %v748
    %756 = vmatpush.msra.mxu0 %v747
    %757 = vmatpush.msra.mxu0 %v746
    %758 = vmatpush.msra.mxu0 %v745
    %759 = vmatpush.msra.mxu0 %v744
    %760 = vmatpush.msra.mxu0 %v743
    %761 = vmatpush.msra.mxu0 %v742
    %762 = vmatpush.msra.mxu0 %v741
    %763 = vmatpush.msra.mxu0 %v740
    %764 = vmatpush.msra.mxu0 %v739
    %765 = vmatpush.msra.mxu0 %v738
    %766 = vmatpush.msra.mxu0 %v737
    %767 = vmatpush.msra.mxu0 %v736
    %768 = vmatmul.f32.gmra.mxu0 %v734
    %v769 = vpop.f32.mrf.mxu0
    %v770 = vadd.f32 0.0, %v769
    %771 = vmatmul.f32.gmra.mxu0 %v735
    %v772 = vpop.f32.mrf.mxu0
    %v773 = vadd.f32 0.0, %v772
    %774 = vdwg.mxu0
    %775 = vmatpush.msra.mxu0 %v733
    %776 = vmatpush.msra.mxu0 %v732
    %777 = vmatpush.msra.mxu0 %v731
    %778 = vmatpush.msra.mxu0 %v730
    %779 = vmatpush.msra.mxu0 %v729
    %780 = vmatpush.msra.mxu0 %v728
    %781 = vmatpush.msra.mxu0 %v727
    %782 = vmatpush.msra.mxu0 %v726
    %783 = vmatpush.msra.mxu0 %v725
    %784 = vmatpush.msra.mxu0 %v724
    %785 = vmatpush.msra.mxu0 %v723
    %786 = vmatpush.msra.mxu0 %v722
    %787 = vmatpush.msra.mxu0 %v721
    %788 = vmatpush.msra.mxu0 %v720
    %789 = vmatpush.msra.mxu0 %v719
    %790 = vmatpush.msra.mxu0 %v718
    %791 = vmatmul.f32.gmra.mxu0 %v716
    %v792 = vpop.f32.mrf.mxu0
    %v793 = vadd.f32 %v770, %v792
    %794 = vmatmul.f32.gmra.mxu0 %v717
    %v795 = vpop.f32.mrf.mxu0
    %v796 = vadd.f32 %v773, %v795
    %797 = vdwg.mxu0
    %v798 = vld [vmem:[%s4] sm:$0x1]
    %v800 = vperm.slane %v798, 0
    %v802 = vadd.f32 %v793, %v800
    %v803 = vadd.f32 %v796, %v800
    %804 = vst [vmem:[#allocation9] sm:$0xff] %v802
    %805 = vst [vmem:[#allocation9 + $0x8] sm:$0xff] %v803
    // Predicated region
    $region34: #{tpu_custom_call.1} parent=1 // pred_check
      _
    $region35: #{tpu_custom_call.1} parent=1 // pred_check_branch
      %807 = sbr.rel (0) target = $region37
    $region36: #{tpu_custom_call.1} parent=1 // pred_region
      %809 = vsyncadd [#allocation6], 0
      %s810 = sshll.u32 [#allocation9], 4
      %s811 = int_to_ptr.vmem [resolvable:$true] %s810
      %s812 = sshll.u32 %s5, 4
      %s813 = int_to_ptr.hbm [resolvable:$true] %s812
      %818 = dma.vmem_to_hbm [thread:$0]  %s811, 256, %s813, [#allocation6], 128, 128, 8
    $region37: #{tpu_custom_call.1} parent=1 // pred_fallthru
      _
    // Predicated region
    $region38: #{tpu_custom_call.1} parent=1 // pred_check
      _
    $region39: #{tpu_custom_call.1} parent=1 // pred_check_branch
      %820 = sbr.rel (0) target = $region41
    $region40: #{tpu_custom_call.1} parent=1 // pred_region
      %822 = dma.done [#allocation6], 256
    $region41: #{tpu_custom_call.1} parent=1 // pred_fallthru
      _
    %823 = vsyncpa [#allocation5], 1
    %824 = vsyncpa [#allocation8], 1
    %825 = vsyncpa [#allocation6], 1

</llo_original>
